<compile_context>
chip_gen: v7x
topology: tpu7x:2x2x1
jax: 0.10.0
libtpu: 0.0.40
codegen_flags: <defaults>
</compile_context>

<pallas_src>
import jax
import jax.numpy as jnp
from jax.experimental import pallas as pl
from jax.experimental.pallas import tpu as pltpu

IN_DIM, H1, H2, OUT_DIM = 320, 64, 16, 2


def _round_up(n, m):
    return ((n + m - 1) // m) * m


def mlp_kernel(x_ref, w1_ref, b1_ref, w2_ref, b2_ref, w3_ref, b3_ref, o_ref):
    x = x_ref[...]

    # fc1 + ReLU (MXU matmul, f32 accumulate even when x/w1 are bf16)
    h1 = jnp.dot(x, w1_ref[...], preferred_element_type=jnp.float32) + b1_ref[...]
    h1 = jnp.maximum(h1, 0.0)

    # fc2 + ReLU
    h2 = jnp.dot(h1, w2_ref[...], preferred_element_type=jnp.float32) + b2_ref[...]
    h2 = jnp.maximum(h2, 0.0)

    # fc3 + 2-class softmax.
    # softmax([l0, l1])[0] == sigmoid(l0 - l1); avoids cross-lane max/sum reductions
    # on a lane-width-2 axis and guarantees rows sum to 1.
    logits = jnp.dot(h2, w3_ref[...], preferred_element_type=jnp.float32) + b3_ref[...]
    d = logits[:, 0:1] - logits[:, 1:2]          # (TB, 1)
    p0 = 1.0 / (1.0 + jnp.exp(-d))               # stable sigmoid (exp on EUP)
    # NOTE: last-dim-2 output means masked partial stores; output bytes are <1% of
    # input bytes so this is not worth padding to a lane-dense (TB, 128) slab here.
    o_ref[...] = jnp.concatenate([p0, 1.0 - p0], axis=-1)


def multimodal_nn_forward(x, params, *, block_b=1024, bf16_inputs=False):
    """Forward pass of multimodalNN.

    x: (B, 320) float32 (or bf16).  params: dict of pre-transposed weights/biases.
    block_b: max rows per batch tile (multiple of 8).  Re-derive per generation:
             <=~1024-2048 is safe under v5e's 16 MiB scoped-VMEM default and well
             within v6e/v7x budgets.
    bf16_inputs: cast x and w1 to bf16 to halve the dominant HBM stream.
    """
    B = x.shape[0]
    w1, b1, w2, b2, w3, b3 = (
        params["w1"], params["b1"], params["w2"],
        params["b2"], params["w3"], params["b3"],
    )

    if bf16_inputs:
        x = x.astype(jnp.bfloat16)
        w1 = w1.astype(jnp.bfloat16)

    # Batch tile: multiple of 8 sublanes, capped at block_b; pad B up to a multiple
    # of the tile so there is no implicit Pallas padding (padded rows are zeros and
    # get sliced off below).
    tb = min(_round_up(block_b, 8), _round_up(B, 8))
    padded_b = _round_up(B, tb)
    if padded_b != B:
        x = jnp.pad(x, ((0, padded_b - B), (0, 0)))
    grid = (padded_b // tb,)

    # Weights/biases: full-array blocks with constant block index -> DMA'd once,
    # resident in VMEM for the whole grid (no per-tile re-fetch).
    const2 = lambda i: (0, 0)
    w_specs = [
        pl.BlockSpec((IN_DIM, H1), const2),
        pl.BlockSpec((1, H1), const2),
        pl.BlockSpec((H1, H2), const2),
        pl.BlockSpec((1, H2), const2),
        pl.BlockSpec((H2, OUT_DIM), const2),
        pl.BlockSpec((1, OUT_DIM), const2),
    ]
    x_spec = pl.BlockSpec((tb, IN_DIM), lambda i: (i, 0))
    o_spec = pl.BlockSpec((tb, OUT_DIM), lambda i: (i, 0))

    # Advisory cost estimate so XLA schedules the custom call sensibly.
    weight_bytes = sum(int(a.size) * a.dtype.itemsize for a in (w1, b1, w2, b2, w3, b3))
    cost = pl.CostEstimate(
        flops=2 * padded_b * (IN_DIM * H1 + H1 * H2 + H2 * OUT_DIM),
        transcendentals=padded_b,  # one exp (sigmoid) per row
        bytes_accessed=padded_b * IN_DIM * x.dtype.itemsize
        + weight_bytes
        + padded_b * OUT_DIM * 4,
    )

    out = pl.pallas_call(
        mlp_kernel,
        out_shape=jax.ShapeDtypeStruct((padded_b, OUT_DIM), jnp.float32),
        grid=grid,
        in_specs=[x_spec] + w_specs,
        out_specs=o_spec,
        compiler_params=pltpu.CompilerParams(
            dimension_semantics=("parallel",),  # megacore sharding on v7x
        ),
        cost_estimate=cost,
    )(x, w1, b1, w2, b2, w3, b3)

    return out[:B]


def init_params(key):
    """Init matching PyTorch nn.Linear defaults (uniform +/- 1/sqrt(fan_in)).
    Weights stored transposed: (in_features, out_features); biases as (1, out)."""
    ks = jax.random.split(key, 6)

    def linear(kw, kb, fan_in, fan_out):
        bound = 1.0 / jnp.sqrt(jnp.float32(fan_in))
        w = jax.random.uniform(kw, (fan_in, fan_out), jnp.float32, -bound, bound)
        b = jax.random.uniform(kb, (1, fan_out), jnp.float32, -bound, bound)
        return w, b

    w1, b1 = linear(ks[0], ks[1], IN_DIM, H1)
    w2, b2 = linear(ks[2], ks[3], H1, H2)
    w3, b3 = linear(ks[4], ks[5], H2, OUT_DIM)
    return {"w1": w1, "b1": b1, "w2": w2, "b2": b2, "w3": w3, "b3": b3}


def reference_forward(x, p):
    h1 = jnp.maximum(x @ p["w1"] + p["b1"], 0.0)
    h2 = jnp.maximum(h1 @ p["w2"] + p["b2"], 0.0)
    logits = h2 @ p["w3"] + p["b3"]
    return jax.nn.softmax(logits, axis=1)


if __name__ == "__main__":
    key = jax.random.PRNGKey(0)
    k_param, k_x = jax.random.split(key)

    params = init_params(k_param)

    # Small test that still exercises the batch grid: B=20 rows with 8-row tiles
    # -> pad to 24, grid of 3 tiles, padded rows sliced off in the wrapper.
    B = 20
    x = jax.random.normal(k_x, (B, IN_DIM), jnp.float32)

    out = multimodal_nn_forward(x, params, block_b=8)
    out = jax.block_until_ready(out)
    ref = reference_forward(x, params)

    assert out.shape == (B, OUT_DIM)
    assert jnp.allclose(out, ref, atol=1e-5, rtol=1e-5), "mismatch vs JAX reference"
    assert jnp.allclose(jnp.sum(out, axis=1), 1.0, atol=1e-5), "softmax rows must sum to 1"

    # Default large-tile path with bf16 x/w1 stream (half-width HBM traffic).
    out_bf16 = multimodal_nn_forward(x, params, bf16_inputs=True)
    out_bf16 = jax.block_until_ready(out_bf16)
    assert out_bf16.shape == (B, OUT_DIM)
    assert float(jnp.max(jnp.abs(out_bf16 - ref))) < 5e-2, "bf16 path diverged too far"
    assert jnp.allclose(jnp.sum(out_bf16, axis=1), 1.0, atol=1e-3)

    print("KERNEL_OK")
</pallas_src>

<mosaic_0001>
module attributes {stable_mosaic.version = 11 : i64} {
  func.func @mlp_kernel(%arg0: i32, %arg1: memref<8x320xf32, #tpu.memory_space<vmem>>, %arg2: memref<320x64xf32, #tpu.memory_space<vmem>>, %arg3: memref<1x64xf32, #tpu.memory_space<vmem>>, %arg4: memref<64x16xf32, #tpu.memory_space<vmem>>, %arg5: memref<1x16xf32, #tpu.memory_space<vmem>>, %arg6: memref<16x2xf32, #tpu.memory_space<vmem>>, %arg7: memref<1x2xf32, #tpu.memory_space<vmem>>, %arg8: memref<8x2xf32, #tpu.memory_space<vmem>>) attributes {dimension_semantics = [#tpu.dimension_semantics<parallel>], iteration_bounds = array<i64: 3>, scalar_prefetch = 0 : i64, scratch_operands = 0 : i64, tpu.core_type = #tpu.core_type<tc>, window_params = [{transform_indices = @transform_0, window_bounds = array<i64: 8, 320>}, {pipeline_mode = #tpu.pipeline_mode<synchronous>, transform_indices = @transform_1, window_bounds = array<i64: 320, 64>}, {pipeline_mode = #tpu.pipeline_mode<synchronous>, transform_indices = @transform_2, window_bounds = array<i64: 1, 64>}, {pipeline_mode = #tpu.pipeline_mode<synchronous>, transform_indices = @transform_3, window_bounds = array<i64: 64, 16>}, {pipeline_mode = #tpu.pipeline_mode<synchronous>, transform_indices = @transform_4, window_bounds = array<i64: 1, 16>}, {pipeline_mode = #tpu.pipeline_mode<synchronous>, transform_indices = @transform_5, window_bounds = array<i64: 16, 2>}, {pipeline_mode = #tpu.pipeline_mode<synchronous>, transform_indices = @transform_6, window_bounds = array<i64: 1, 2>}, {transform_indices = @transform_7, window_bounds = array<i64: 8, 2>}]} {
    %c0 = arith.constant 0 : index
    %c0_0 = arith.constant 0 : index
    %0 = vector.load %arg1[%c0, %c0_0] : memref<8x320xf32, #tpu.memory_space<vmem>>, vector<8x320xf32>
    %c0_1 = arith.constant 0 : index
    %c0_2 = arith.constant 0 : index
    %1 = vector.load %arg2[%c0_1, %c0_2] : memref<320x64xf32, #tpu.memory_space<vmem>>, vector<320x64xf32>
    %cst = arith.constant dense<0.000000e+00> : vector<8x64xf32>
    %2 = tpu.matmul %0, %1, %cst {dimension_numbers = #tpu.dot_dimension_numbers<[1], [0], [0], [1], [0, 0, 1, 1], [], []>} : vector<8x320xf32>, vector<320x64xf32>, vector<8x64xf32> -> vector<8x64xf32>
    %c0_3 = arith.constant 0 : index
    %c0_4 = arith.constant 0 : index
    %3 = vector.load %arg3[%c0_3, %c0_4] : memref<1x64xf32, #tpu.memory_space<vmem>>, vector<1x64xf32>
    %4 = vector.broadcast %3 : vector<1x64xf32> to vector<8x64xf32>
    %5 = arith.addf %2, %4 : vector<8x64xf32>
    %cst_5 = arith.constant 0.000000e+00 : f32
    %6 = vector.broadcast %cst_5 : f32 to vector<8x64xf32>
    %7 = arith.maximumf %5, %6 : vector<8x64xf32>
    %c0_6 = arith.constant 0 : index
    %c0_7 = arith.constant 0 : index
    %8 = vector.load %arg4[%c0_6, %c0_7] : memref<64x16xf32, #tpu.memory_space<vmem>>, vector<64x16xf32>
    %cst_8 = arith.constant dense<0.000000e+00> : vector<8x16xf32>
    %9 = tpu.matmul %7, %8, %cst_8 {dimension_numbers = #tpu.dot_dimension_numbers<[1], [0], [0], [1], [0, 0, 1, 1], [], []>} : vector<8x64xf32>, vector<64x16xf32>, vector<8x16xf32> -> vector<8x16xf32>
    %c0_9 = arith.constant 0 : index
    %c0_10 = arith.constant 0 : index
    %10 = vector.load %arg5[%c0_9, %c0_10] : memref<1x16xf32, #tpu.memory_space<vmem>>, vector<1x16xf32>
    %11 = vector.broadcast %10 : vector<1x16xf32> to vector<8x16xf32>
    %12 = arith.addf %9, %11 : vector<8x16xf32>
    %cst_11 = arith.constant 0.000000e+00 : f32
    %13 = vector.broadcast %cst_11 : f32 to vector<8x16xf32>
    %14 = arith.maximumf %12, %13 : vector<8x16xf32>
    %c0_12 = arith.constant 0 : index
    %c0_13 = arith.constant 0 : index
    %15 = vector.load %arg6[%c0_12, %c0_13] : memref<16x2xf32, #tpu.memory_space<vmem>>, vector<16x2xf32>
    %cst_14 = arith.constant dense<0.000000e+00> : vector<8x2xf32>
    %16 = tpu.matmul %14, %15, %cst_14 {dimension_numbers = #tpu.dot_dimension_numbers<[1], [0], [0], [1], [0, 0, 1, 1], [], []>} : vector<8x16xf32>, vector<16x2xf32>, vector<8x2xf32> -> vector<8x2xf32>
    %c0_15 = arith.constant 0 : index
    %c0_16 = arith.constant 0 : index
    %17 = vector.load %arg7[%c0_15, %c0_16] : memref<1x2xf32, #tpu.memory_space<vmem>>, vector<1x2xf32>
    %18 = vector.broadcast %17 : vector<1x2xf32> to vector<8x2xf32>
    %19 = arith.addf %16, %18 : vector<8x2xf32>
    %20 = vector.extract_strided_slice %19 {offsets = [0, 0], sizes = [8, 1], strides = [1, 1]} : vector<8x2xf32> to vector<8x1xf32>
    %21 = vector.extract_strided_slice %19 {offsets = [0, 1], sizes = [8, 1], strides = [1, 1]} : vector<8x2xf32> to vector<8x1xf32>
    %22 = arith.subf %20, %21 : vector<8x1xf32>
    %cst_17 = arith.constant 0.000000e+00 : f32
    %23 = vector.broadcast %cst_17 : f32 to vector<8x1xf32>
    %24 = arith.subf %23, %22 : vector<8x1xf32>
    %25 = math.exp %24 : vector<8x1xf32>
    %cst_18 = arith.constant 1.000000e+00 : f32
    %26 = vector.broadcast %cst_18 : f32 to vector<8x1xf32>
    %27 = arith.addf %26, %25 : vector<8x1xf32>
    %cst_19 = arith.constant 1.000000e+00 : f32
    %28 = vector.broadcast %cst_19 : f32 to vector<8x1xf32>
    %29 = arith.divf %28, %27 : vector<8x1xf32>
    %cst_20 = arith.constant 1.000000e+00 : f32
    %30 = vector.broadcast %cst_20 : f32 to vector<8x1xf32>
    %31 = arith.subf %30, %29 : vector<8x1xf32>
    %32 = tpu.concatenate %29, %31 in 1 : vector<8x1xf32>, vector<8x1xf32> -> vector<8x2xf32>
    %c0_21 = arith.constant 0 : index
    %c0_22 = arith.constant 0 : index
    %33 = vector.load %arg8[%c0_21, %c0_22] : memref<8x2xf32, #tpu.memory_space<vmem>>, vector<8x2xf32>
    tpu.vector_store %arg8[%c0_21, %c0_22], %32 {strides = array<i32>} : memref<8x2xf32, #tpu.memory_space<vmem>>, vector<8x2xf32>,
    return
  }
  func.func @transform_0(%arg0: i32) -> (i32, i32) {
    %c0_i32 = arith.constant 0 : i32
    %c0_i32_0 = arith.constant 0 : i32
    return %arg0, %c0_i32 : i32, i32
  }
  func.func @transform_1(%arg0: i32) -> (i32, i32) {
    %c0_i32 = arith.constant 0 : i32
    %c0_i32_0 = arith.constant 0 : i32
    %c0_i32_1 = arith.constant 0 : i32
    return %c0_i32, %c0_i32_0 : i32, i32
  }
  func.func @transform_2(%arg0: i32) -> (i32, i32) {
    %c0_i32 = arith.constant 0 : i32
    %c0_i32_0 = arith.constant 0 : i32
    %c0_i32_1 = arith.constant 0 : i32
    return %c0_i32, %c0_i32_0 : i32, i32
  }
  func.func @transform_3(%arg0: i32) -> (i32, i32) {
    %c0_i32 = arith.constant 0 : i32
    %c0_i32_0 = arith.constant 0 : i32
    %c0_i32_1 = arith.constant 0 : i32
    return %c0_i32, %c0_i32_0 : i32, i32
  }
  func.func @transform_4(%arg0: i32) -> (i32, i32) {
    %c0_i32 = arith.constant 0 : i32
    %c0_i32_0 = arith.constant 0 : i32
    %c0_i32_1 = arith.constant 0 : i32
    return %c0_i32, %c0_i32_0 : i32, i32
  }
  func.func @transform_5(%arg0: i32) -> (i32, i32) {
    %c0_i32 = arith.constant 0 : i32
    %c0_i32_0 = arith.constant 0 : i32
    %c0_i32_1 = arith.constant 0 : i32
    return %c0_i32, %c0_i32_0 : i32, i32
  }
  func.func @transform_6(%arg0: i32) -> (i32, i32) {
    %c0_i32 = arith.constant 0 : i32
    %c0_i32_0 = arith.constant 0 : i32
    %c0_i32_1 = arith.constant 0 : i32
    return %c0_i32, %c0_i32_0 : i32, i32
  }
  func.func @transform_7(%arg0: i32) -> (i32, i32) {
    %c0_i32 = arith.constant 0 : i32
    %c0_i32_0 = arith.constant 0 : i32
    return %arg0, %c0_i32 : i32, i32
  }
}

</mosaic_0001>

<llo_original>
// kernel: tpu_custom_call.1
$region0: #{tpu_custom_call.1}
  #allocation0 [shape = 'u32[]', space=smem, size = 0x4, offset = 0x4, fixed_abs, tag = 'smem constant byte address 0x4 - core index']
  #allocation1 [shape = 'u32[144,128]{1,0:T(1,128)}', space=vmem, size = 0x12000, scoped, tag = 'internal scratch']
  %s0 = inlined_call_operand.vmem [shape: f32[24,320], index: 0, kind: input, shape index: {}]
  %s1 = inlined_call_operand.vmem [shape: f32[320,64], index: 1, kind: input, shape index: {}]
  %s2 = inlined_call_operand.vmem [shape: f32[1,64], index: 2, kind: input, shape index: {}]
  %s3 = inlined_call_operand.vmem [shape: f32[64,16], index: 3, kind: input, shape index: {}]
  %s4 = inlined_call_operand.vmem [shape: f32[1,16], index: 4, kind: input, shape index: {}]
  %s5 = inlined_call_operand.vmem [shape: f32[16,2], index: 5, kind: input, shape index: {}]
  %s6 = inlined_call_operand.vmem [shape: f32[1,2], index: 6, kind: input, shape index: {}]
  %s7 = inlined_call_operand.vmem [shape: f32[24,2], index: 7, kind: output, shape index: {}]
  %s8 = sld [smem:[#allocation0]]
  $region61: #{tpu_custom_call.1} parent=0
    _
  %s10 = ssub.s32 1, %s8
  %s11 = scalar_select 0, %s10, %s8
  loop: start=0, step=1, limit=5
  $region2: #{tpu_custom_call.1} parent=0 // loop_pre_header
    _
  $region3: #{tpu_custom_call.1} parent=0 // loop_header
    %s13 = sphi 0, %s17
    %p14 = scmp.ge.s32.totalorder %s13, 5
    %s23 = sphi 0, %s25
    %s26 = sphi 0, %s23
    %s27 = sphi 0, %s26
    %s43 = sphi 0, %s27
    %s47 = sphi 0, %s47
    %s49 = sphi 0, %s47
    %s50 = sphi 0, %s49
    %s64 = sphi 0, %s50
    %s68 = sphi 0, %s68
    %s70 = sphi 0, %s68
    %s71 = sphi 0, %s70
    %s85 = sphi 0, %s71
    %s89 = sphi 0, %s89
    %s91 = sphi 0, %s89
    %s92 = sphi 0, %s91
    %s106 = sphi 0, %s92
    %s110 = sphi 0, %s110
    %s112 = sphi 0, %s110
    %s113 = sphi 0, %s112
    %s127 = sphi 0, %s113
    %s131 = sphi 0, %s131
    %s133 = sphi 0, %s131
    %s134 = sphi 0, %s133
    %s148 = sphi 0, %s134
    %s152 = sphi 0, %s152
    %s154 = sphi 0, %s152
    %s155 = sphi 0, %s154
    %s169 = sphi 0, %s155
    %s175 = sphi 0, %s177
    %s178 = sphi 0, %s175
    %s179 = sphi 0, %s178
    %s195 = sphi 0, %s179
  $region4: #{tpu_custom_call.1} parent=0 // loop_header_branch
    %16 = sbr.rel (%p14) target = $region8
  $region5: #{tpu_custom_call.1} parent=0 // loop_body
    %s18 = ssub.s32 %s13, 1
    %s19 = ssub.s32 %s13, 2
    %s20 = sadd.s32 %s13, 1
    %s21 = ssub.s32 %s13, %s20
    %p22 = scmp.eq.s32.totalorder %s21, 0
    %s24 = sadd.s32 %s23, 1
    %s25 = scalar_select %p22, %s23, %s24
    %p28 = pneg %p22
    %p29 = scmp.eq.s32.totalorder %s13, 2
    %p30 = por %p28, %p29
    %p31 = scmp.ne.s32.totalorder %s23, %s26
    %p32 = scmp.eq.s32.totalorder %s13, 0
    %p33 = por %p31, %p32
    %p34 = scmp.ne.s32.totalorder %s23, %s26
    %p35 = scmp.eq.s32.totalorder %s18, 2
    %p36 = por %p34, %p35
    %p37 = scmp.ne.s32.totalorder %s26, %s27
    %p38 = scmp.eq.s32.totalorder %s18, 0
    %p39 = por %p37, %p38
    %p40 = scmp.ne.s32.totalorder %s26, %s27
    %p41 = scmp.eq.s32.totalorder %s19, 2
    %p42 = por %p40, %p41
    %p44 = scmp.ne.s32.totalorder %s27, %s43
    %p45 = scmp.eq.s32.totalorder %s19, 0
    %p46 = por %p44, %p45
    %s48 = sadd.s32 %s47, 1
    %p51 = scmp.eq.s32.totalorder %s13, 2
    %p52 = scmp.ne.s32.totalorder %s47, %s49
    %p53 = scmp.eq.s32.totalorder %s13, 0
    %p54 = por %p52, %p53
    %p55 = scmp.ne.s32.totalorder %s47, %s49
    %p56 = scmp.eq.s32.totalorder %s18, 2
    %p57 = por %p55, %p56
    %p58 = scmp.ne.s32.totalorder %s49, %s50
    %p59 = scmp.eq.s32.totalorder %s18, 0
    %p60 = por %p58, %p59
    %p61 = scmp.ne.s32.totalorder %s49, %s50
    %p62 = scmp.eq.s32.totalorder %s19, 2
    %p63 = por %p61, %p62
    %p65 = scmp.ne.s32.totalorder %s50, %s64
    %p66 = scmp.eq.s32.totalorder %s19, 0
    %p67 = por %p65, %p66
    %s69 = sadd.s32 %s68, 1
    %p72 = scmp.eq.s32.totalorder %s13, 2
    %p73 = scmp.ne.s32.totalorder %s68, %s70
    %p74 = scmp.eq.s32.totalorder %s13, 0
    %p75 = por %p73, %p74
    %p76 = scmp.ne.s32.totalorder %s68, %s70
    %p77 = scmp.eq.s32.totalorder %s18, 2
    %p78 = por %p76, %p77
    %p79 = scmp.ne.s32.totalorder %s70, %s71
    %p80 = scmp.eq.s32.totalorder %s18, 0
    %p81 = por %p79, %p80
    %p82 = scmp.ne.s32.totalorder %s70, %s71
    %p83 = scmp.eq.s32.totalorder %s19, 2
    %p84 = por %p82, %p83
    %p86 = scmp.ne.s32.totalorder %s71, %s85
    %p87 = scmp.eq.s32.totalorder %s19, 0
    %p88 = por %p86, %p87
    %s90 = sadd.s32 %s89, 1
    %p93 = scmp.eq.s32.totalorder %s13, 2
    %p94 = scmp.ne.s32.totalorder %s89, %s91
    %p95 = scmp.eq.s32.totalorder %s13, 0
    %p96 = por %p94, %p95
    %p97 = scmp.ne.s32.totalorder %s89, %s91
    %p98 = scmp.eq.s32.totalorder %s18, 2
    %p99 = por %p97, %p98
    %p100 = scmp.ne.s32.totalorder %s91, %s92
    %p101 = scmp.eq.s32.totalorder %s18, 0
    %p102 = por %p100, %p101
    %p103 = scmp.ne.s32.totalorder %s91, %s92
    %p104 = scmp.eq.s32.totalorder %s19, 2
    %p105 = por %p103, %p104
    %p107 = scmp.ne.s32.totalorder %s92, %s106
    %p108 = scmp.eq.s32.totalorder %s19, 0
    %p109 = por %p107, %p108
    %s111 = sadd.s32 %s110, 1
    %p114 = scmp.eq.s32.totalorder %s13, 2
    %p115 = scmp.ne.s32.totalorder %s110, %s112
    %p116 = scmp.eq.s32.totalorder %s13, 0
    %p117 = por %p115, %p116
    %p118 = scmp.ne.s32.totalorder %s110, %s112
    %p119 = scmp.eq.s32.totalorder %s18, 2
    %p120 = por %p118, %p119
    %p121 = scmp.ne.s32.totalorder %s112, %s113
    %p122 = scmp.eq.s32.totalorder %s18, 0
    %p123 = por %p121, %p122
    %p124 = scmp.ne.s32.totalorder %s112, %s113
    %p125 = scmp.eq.s32.totalorder %s19, 2
    %p126 = por %p124, %p125
    %p128 = scmp.ne.s32.totalorder %s113, %s127
    %p129 = scmp.eq.s32.totalorder %s19, 0
    %p130 = por %p128, %p129
    %s132 = sadd.s32 %s131, 1
    %p135 = scmp.eq.s32.totalorder %s13, 2
    %p136 = scmp.ne.s32.totalorder %s131, %s133
    %p137 = scmp.eq.s32.totalorder %s13, 0
    %p138 = por %p136, %p137
    %p139 = scmp.ne.s32.totalorder %s131, %s133
    %p140 = scmp.eq.s32.totalorder %s18, 2
    %p141 = por %p139, %p140
    %p142 = scmp.ne.s32.totalorder %s133, %s134
    %p143 = scmp.eq.s32.totalorder %s18, 0
    %p144 = por %p142, %p143
    %p145 = scmp.ne.s32.totalorder %s133, %s134
    %p146 = scmp.eq.s32.totalorder %s19, 2
    %p147 = por %p145, %p146
    %p149 = scmp.ne.s32.totalorder %s134, %s148
    %p150 = scmp.eq.s32.totalorder %s19, 0
    %p151 = por %p149, %p150
    %s153 = sadd.s32 %s152, 1
    %p156 = scmp.eq.s32.totalorder %s13, 2
    %p157 = scmp.ne.s32.totalorder %s152, %s154
    %p158 = scmp.eq.s32.totalorder %s13, 0
    %p159 = por %p157, %p158
    %p160 = scmp.ne.s32.totalorder %s152, %s154
    %p161 = scmp.eq.s32.totalorder %s18, 2
    %p162 = por %p160, %p161
    %p163 = scmp.ne.s32.totalorder %s154, %s155
    %p164 = scmp.eq.s32.totalorder %s18, 0
    %p165 = por %p163, %p164
    %p166 = scmp.ne.s32.totalorder %s154, %s155
    %p167 = scmp.eq.s32.totalorder %s19, 2
    %p168 = por %p166, %p167
    %p170 = scmp.ne.s32.totalorder %s155, %s169
    %p171 = scmp.eq.s32.totalorder %s19, 0
    %p172 = por %p170, %p171
    %s173 = ssub.s32 %s13, %s20
    %p174 = scmp.eq.s32.totalorder %s173, 0
    %s176 = sadd.s32 %s175, 1
    %s177 = scalar_select %p174, %s175, %s176
    %p180 = pneg %p174
    %p181 = scmp.eq.s32.totalorder %s13, 2
    %p182 = por %p180, %p181
    %p183 = scmp.ne.s32.totalorder %s175, %s178
    %p184 = scmp.eq.s32.totalorder %s13, 0
    %p185 = por %p183, %p184
    %p186 = scmp.ne.s32.totalorder %s175, %s178
    %p187 = scmp.eq.s32.totalorder %s18, 2
    %p188 = por %p186, %p187
    %p189 = scmp.ne.s32.totalorder %s178, %s179
    %p190 = scmp.eq.s32.totalorder %s18, 0
    %p191 = por %p189, %p190
    %p192 = scmp.ne.s32.totalorder %s178, %s179
    %p193 = scmp.eq.s32.totalorder %s19, 2
    %p194 = por %p192, %p193
    %p196 = scmp.ne.s32.totalorder %s179, %s195
    %p197 = scmp.eq.s32.totalorder %s19, 0
    %p198 = por %p196, %p197
    %p199 = scmp.le.s32.totalorder 1, %s13
    %p200 = scmp.lt.s32.totalorder %s13, 4
    %p201 = pnand %p199, %p200
    %p202 = pneg %p201
    // Predicated region
    $region9: #{tpu_custom_call.1} parent=5 // pred_check
      _
    $region10: #{tpu_custom_call.1} parent=5 // pred_check_branch
      %204 = sbr.rel (%p201) target = $region12
    $region11: #{tpu_custom_call.1} parent=5 // pred_region
      %s205 = ssub.s32 %s13, 1
      // Predicated region
      $region13: #{tpu_custom_call.1} parent=11 // pred_check
        %p206 = pneg %p60
      $region14: #{tpu_custom_call.1} parent=11 // pred_check_branch
        %208 = sbr.rel (%p206) target = $region16
      $region15: #{tpu_custom_call.1} parent=11 // pred_region
        _
      $region16: #{tpu_custom_call.1} parent=11 // pred_fallthru
        _
      // Predicated region
      $region17: #{tpu_custom_call.1} parent=11 // pred_check
        %p209 = pneg %p81
      $region18: #{tpu_custom_call.1} parent=11 // pred_check_branch
        %211 = sbr.rel (%p209) target = $region20
      $region19: #{tpu_custom_call.1} parent=11 // pred_region
        _
      $region20: #{tpu_custom_call.1} parent=11 // pred_fallthru
        _
      // Predicated region
      $region21: #{tpu_custom_call.1} parent=11 // pred_check
        %p212 = pneg %p102
      $region22: #{tpu_custom_call.1} parent=11 // pred_check_branch
        %214 = sbr.rel (%p212) target = $region24
      $region23: #{tpu_custom_call.1} parent=11 // pred_region
        _
      $region24: #{tpu_custom_call.1} parent=11 // pred_fallthru
        _
      // Predicated region
      $region25: #{tpu_custom_call.1} parent=11 // pred_check
        %p215 = pneg %p123
      $region26: #{tpu_custom_call.1} parent=11 // pred_check_branch
        %217 = sbr.rel (%p215) target = $region28
      $region27: #{tpu_custom_call.1} parent=11 // pred_region
        _
      $region28: #{tpu_custom_call.1} parent=11 // pred_fallthru
        _
      // Predicated region
      $region29: #{tpu_custom_call.1} parent=11 // pred_check
        %p218 = pneg %p144
      $region30: #{tpu_custom_call.1} parent=11 // pred_check_branch
        %220 = sbr.rel (%p218) target = $region32
      $region31: #{tpu_custom_call.1} parent=11 // pred_region
        _
      $region32: #{tpu_custom_call.1} parent=11 // pred_fallthru
        _
      // Predicated region
      $region33: #{tpu_custom_call.1} parent=11 // pred_check
        %p221 = pneg %p165
      $region34: #{tpu_custom_call.1} parent=11 // pred_check_branch
        %223 = sbr.rel (%p221) target = $region36
      $region35: #{tpu_custom_call.1} parent=11 // pred_region
        _
      $region36: #{tpu_custom_call.1} parent=11 // pred_fallthru
        _
    $region12: #{tpu_custom_call.1} parent=5 // pred_fallthru
      _
    %p224 = scmp.lt.s32.totalorder %s13, 3
    // Predicated region
    $region37: #{tpu_custom_call.1} parent=5 // pred_check
      %p225 = pneg %p224
    $region38: #{tpu_custom_call.1} parent=5 // pred_check_branch
      %227 = sbr.rel (%p225) target = $region40
    $region39: #{tpu_custom_call.1} parent=5 // pred_region
      // Predicated region
      $region41: #{tpu_custom_call.1} parent=39 // pred_check
        %p228 = pneg %p33
      $region42: #{tpu_custom_call.1} parent=39 // pred_check_branch
        %230 = sbr.rel (%p228) target = $region44
      $region43: #{tpu_custom_call.1} parent=39 // pred_region
        %p231 = scmp.lt.s32.totalorder %s13, 2
        %s232 = scalar_select %p231, %s13, 2
        %s233 = smul.addr %s232, 3
        %s234 = smul.addr %s233, 8
        %s235 = scalar_lea.vmem %s0, %s234
      $region44: #{tpu_custom_call.1} parent=39 // pred_fallthru
        _
    $region40: #{tpu_custom_call.1} parent=5 // pred_fallthru
      _
    %p236 = scmp.le.s32.totalorder 1, %s13
    %p237 = scmp.lt.s32.totalorder %s13, 4
    %p238 = pnand %p236, %p237
    %p239 = pneg %p238
    // Predicated region
    $region45: #{tpu_custom_call.1} parent=5 // pred_check
      _
    $region46: #{tpu_custom_call.1} parent=5 // pred_check_branch
      %241 = sbr.rel (%p238) target = $region48
    $region47: #{tpu_custom_call.1} parent=5 // pred_region
      %s242 = ssub.s32 %s13, 1
      %p243 = scmp.lt.s32.totalorder %s18, 2
      %s244 = scalar_select %p243, %s18, 2
      %s245 = smul.addr %s244, 3
      %s246 = smul.addr %s245, 8
      %s247 = scalar_lea.vmem %s0, %s246
      %p248 = pneg %p39
      %p249 = pneg %p36
      %p250 = pneg %p60
      %p251 = pneg %p57
      %p252 = pneg %p81
      %p253 = pneg %p78
      %p254 = pneg %p102
      %p255 = pneg %p99
      %p256 = pneg %p123
      %p257 = pneg %p120
      %p258 = pneg %p144
      %p259 = pneg %p141
      %p260 = pneg %p165
      %p261 = pneg %p162
      %p262 = pneg %p191
      %p263 = pneg %p188
      %p264 = scmp.lt.s32.totalorder %s18, 2
      %s265 = scalar_select %p264, %s18, 2
      %s266 = smul.addr %s265, 8
      %s267 = scalar_lea.vmem %s7, %s266
      %p268 = scmp.lt.s32.totalorder %s18, 2
      %s269 = scalar_select %p268, %s18, 2
      %s270 = smul.addr %s269, 3
      %s271 = smul.addr %s270, 8
      %s272 = scalar_lea.vmem %s0, %s271
      %p273 = scmp.lt.s32.totalorder %s18, 2
      %s274 = scalar_select %p273, %s18, 2
      %s275 = smul.addr %s274, 8
      %s276 = scalar_lea.vmem %s7, %s275
      %v277 = vld [vmem:[%s272] sm:$0xff]
      %v278 = vld [vmem:[%s272 + $0x8] sm:$0xff]
      %v279 = vld [vmem:[%s272 + $0x10] sm:$0xff]
      %v280 = vld [vmem:[%s1] sm:$0xff]
      %v281 = vld [vmem:[%s1 + $0x8] sm:$0xff]
      %v282 = vld [vmem:[%s1 + $0x10] sm:$0xff]
      %v283 = vld [vmem:[%s1 + $0x18] sm:$0xff]
      %v284 = vld [vmem:[%s1 + $0x20] sm:$0xff]
      %v285 = vld [vmem:[%s1 + $0x28] sm:$0xff]
      %v286 = vld [vmem:[%s1 + $0x30] sm:$0xff]
      %v287 = vld [vmem:[%s1 + $0x38] sm:$0xff]
      %v288 = vld [vmem:[%s1 + $0x40] sm:$0xff]
      %v289 = vld [vmem:[%s1 + $0x48] sm:$0xff]
      %v290 = vld [vmem:[%s1 + $0x50] sm:$0xff]
      %v291 = vld [vmem:[%s1 + $0x58] sm:$0xff]
      %v292 = vld [vmem:[%s1 + $0x60] sm:$0xff]
      %v293 = vld [vmem:[%s1 + $0x68] sm:$0xff]
      %v294 = vld [vmem:[%s1 + $0x70] sm:$0xff]
      %v295 = vld [vmem:[%s1 + $0x78] sm:$0xff]
      %v296 = vld [vmem:[%s1 + $0x80] sm:$0xff]
      %v297 = vld [vmem:[%s1 + $0x88] sm:$0xff]
      %v298 = vld [vmem:[%s1 + $0x90] sm:$0xff]
      %v299 = vld [vmem:[%s1 + $0x98] sm:$0xff]
      %v300 = vld [vmem:[%s1 + $0xa0] sm:$0xff]
      %v301 = vld [vmem:[%s1 + $0xa8] sm:$0xff]
      %v302 = vld [vmem:[%s1 + $0xb0] sm:$0xff]
      %v303 = vld [vmem:[%s1 + $0xb8] sm:$0xff]
      %v304 = vld [vmem:[%s1 + $0xc0] sm:$0xff]
      %v305 = vld [vmem:[%s1 + $0xc8] sm:$0xff]
      %v306 = vld [vmem:[%s1 + $0xd0] sm:$0xff]
      %v307 = vld [vmem:[%s1 + $0xd8] sm:$0xff]
      %v308 = vld [vmem:[%s1 + $0xe0] sm:$0xff]
      %v309 = vld [vmem:[%s1 + $0xe8] sm:$0xff]
      %v310 = vld [vmem:[%s1 + $0xf0] sm:$0xff]
      %v311 = vld [vmem:[%s1 + $0xf8] sm:$0xff]
      %v312 = vld [vmem:[%s1 + $0x100] sm:$0xff]
      %v313 = vld [vmem:[%s1 + $0x108] sm:$0xff]
      %v314 = vld [vmem:[%s1 + $0x110] sm:$0xff]
      %v315 = vld [vmem:[%s1 + $0x118] sm:$0xff]
      %v316 = vld [vmem:[%s1 + $0x120] sm:$0xff]
      %v317 = vld [vmem:[%s1 + $0x128] sm:$0xff]
      %v318 = vld [vmem:[%s1 + $0x130] sm:$0xff]
      %v319 = vld [vmem:[%s1 + $0x138] sm:$0xff]
      %v320 = vld [vmem:[%s2] sm:$0x1]
      %v322 = vlaneseq
      %v323 = vshrl.u32 %v322, 7
      %v324 = vsub.s32 0, %v323
      %v325 = vrot.slane %v320, %v324
      %vm327 = vcmask 523264
      %v329 = vsel %vm327, %v279, 0
      %331 = vmatprep.subr.mxu0 0.0
      %332 = vmatpush1.msra.mxu0 %v280
      %333 = vmatprep.subr.mxu0 0.0
      %334 = vmatpush1.msra.mxu0 %v281
      %335 = vmatprep.subr.mxu0 0.0
      %336 = vmatpush1.msra.mxu0 %v282
      %337 = vmatprep.subr.mxu0 0.0
      %338 = vmatpush1.msra.mxu0 %v283
      %339 = vmatprep.subr.mxu0 0.0
      %340 = vmatpush1.msra.mxu0 %v284
      %341 = vmatprep.subr.mxu0 0.0
      %342 = vmatpush1.msra.mxu0 %v285
      %343 = vmatprep.subr.mxu0 0.0
      %344 = vmatpush1.msra.mxu0 %v286
      %345 = vmatprep.subr.mxu0 0.0
      %346 = vmatpush1.msra.mxu0 %v287
      %347 = vmatprep.subr.mxu0 0.0
      %348 = vmatpush1.msra.mxu0 %v288
      %349 = vmatprep.subr.mxu0 0.0
      %350 = vmatpush1.msra.mxu0 %v289
      %351 = vmatprep.subr.mxu0 0.0
      %352 = vmatpush1.msra.mxu0 %v290
      %353 = vmatprep.subr.mxu0 0.0
      %354 = vmatpush1.msra.mxu0 %v291
      %355 = vmatprep.subr.mxu0 0.0
      %356 = vmatpush1.msra.mxu0 %v292
      %357 = vmatprep.subr.mxu0 0.0
      %358 = vmatpush1.msra.mxu0 %v293
      %359 = vmatprep.subr.mxu0 0.0
      %360 = vmatpush1.msra.mxu0 %v294
      %361 = vmatprep.subr.mxu0 0.0
      %362 = vmatpush1.msra.mxu0 %v295
      %363 = vmatprep.subr.mxu0 0.0
      %364 = vmatpush1.msra.mxu0 %v296
      %365 = vmatprep.subr.mxu0 0.0
      %366 = vmatpush1.msra.mxu0 %v297
      %367 = vmatprep.subr.mxu0 0.0
      %368 = vmatpush1.msra.mxu0 %v298
      %369 = vmatprep.subr.mxu0 0.0
      %370 = vmatpush1.msra.mxu0 %v299
      %371 = vmatprep.subr.mxu0 0.0
      %372 = vmatpush1.msra.mxu0 %v300
      %373 = vmatprep.subr.mxu0 0.0
      %374 = vmatpush1.msra.mxu0 %v301
      %375 = vmatprep.subr.mxu0 0.0
      %376 = vmatpush1.msra.mxu0 %v302
      %377 = vmatprep.subr.mxu0 0.0
      %378 = vmatpush1.msra.mxu0 %v303
      %379 = vmatprep.subr.mxu0 0.0
      %380 = vmatpush1.msra.mxu0 %v304
      %381 = vmatprep.subr.mxu0 0.0
      %382 = vmatpush1.msra.mxu0 %v305
      %383 = vmatprep.subr.mxu0 0.0
      %384 = vmatpush1.msra.mxu0 %v306
      %385 = vmatprep.subr.mxu0 0.0
      %386 = vmatpush1.msra.mxu0 %v307
      %387 = vmatprep.subr.mxu0 0.0
      %388 = vmatpush1.msra.mxu0 %v308
      %389 = vmatprep.subr.mxu0 0.0
      %390 = vmatpush1.msra.mxu0 %v309
      %391 = vmatprep.subr.mxu0 0.0
      %392 = vmatpush1.msra.mxu0 %v310
      %393 = vmatprep.subr.mxu0 0.0
      %394 = vmatpush1.msra.mxu0 %v311
      %395 = vmatprep.mubr.f32.mxu0 %v278
      %396 = vmatmul.mubr.f32.gmra.mrb[0].mxu0 %v277
      %v397 = vpop.f32.mrb[0].mxu0
      %v398 = vadd.f32 %v325, %v397
      %v399 = vpop.f32.mrb[0].mxu0
      %400 = vdwg.mxu0
      %401 = vmatprep.subr.mxu0 0.0
      %402 = vmatpush1.msra.mxu0 %v312
      %403 = vmatprep.subr.mxu0 0.0
      %404 = vmatpush1.msra.mxu0 %v313
      %405 = vmatprep.subr.mxu0 0.0
      %406 = vmatpush1.msra.mxu0 %v314
      %407 = vmatprep.subr.mxu0 0.0
      %408 = vmatpush1.msra.mxu0 %v315
      %409 = vmatprep.subr.mxu0 0.0
      %410 = vmatpush1.msra.mxu0 %v316
      %411 = vmatprep.subr.mxu0 0.0
      %412 = vmatpush1.msra.mxu0 %v317
      %413 = vmatprep.subr.mxu0 0.0
      %414 = vmatpush1.msra.mxu0 %v318
      %415 = vmatprep.subr.mxu0 0.0
      %416 = vmatpush1.msra.mxu0 %v319
      %417 = vmatprep.subr.mxu0 0.0
      %418 = vmatpush1.msra.mxu0 0.0
      %419 = vmatprep.subr.mxu0 0.0
      %420 = vmatpush1.msra.mxu0 0.0
      %421 = vmatprep.subr.mxu0 0.0
      %422 = vmatpush1.msra.mxu0 0.0
      %423 = vmatprep.subr.mxu0 0.0
      %424 = vmatpush1.msra.mxu0 0.0
      %425 = vmatprep.subr.mxu0 0.0
      %426 = vmatpush1.msra.mxu0 0.0
      %427 = vmatprep.subr.mxu0 0.0
      %428 = vmatpush1.msra.mxu0 0.0
      %429 = vmatprep.subr.mxu0 0.0
      %430 = vmatpush1.msra.mxu0 0.0
      %431 = vmatprep.subr.mxu0 0.0
      %432 = vmatpush1.msra.mxu0 0.0
      %433 = vmatprep.subr.mxu0 0.0
      %434 = vmatpush1.msra.mxu0 0.0
      %435 = vmatprep.subr.mxu0 0.0
      %436 = vmatpush1.msra.mxu0 0.0
      %437 = vmatprep.subr.mxu0 0.0
      %438 = vmatpush1.msra.mxu0 0.0
      %439 = vmatprep.subr.mxu0 0.0
      %440 = vmatpush1.msra.mxu0 0.0
      %441 = vmatprep.subr.mxu0 0.0
      %442 = vmatpush1.msra.mxu0 0.0
      %443 = vmatprep.subr.mxu0 0.0
      %444 = vmatpush1.msra.mxu0 0.0
      %445 = vmatprep.subr.mxu0 0.0
      %446 = vmatpush1.msra.mxu0 0.0
      %447 = vmatprep.subr.mxu0 0.0
      %448 = vmatpush1.msra.mxu0 0.0
      %449 = vmatprep.subr.mxu0 0.0
      %450 = vmatpush1.msra.mxu0 0.0
      %451 = vmatprep.subr.mxu0 0.0
      %452 = vmatpush1.msra.mxu0 0.0
      %453 = vmatprep.subr.mxu0 0.0
      %454 = vmatpush1.msra.mxu0 0.0
      %455 = vmatprep.subr.mxu0 0.0
      %456 = vmatpush1.msra.mxu0 0.0
      %457 = vmatprep.subr.mxu0 0.0
      %458 = vmatpush1.msra.mxu0 0.0
      %459 = vmatprep.subr.mxu0 0.0
      %460 = vmatpush1.msra.mxu0 0.0
      %461 = vmatprep.subr.mxu0 0.0
      %462 = vmatpush1.msra.mxu0 0.0
      %463 = vmatprep.subr.mxu0 0.0
      %464 = vmatpush1.msra.mxu0 0.0
      %465 = vmatprep.mubr.f32.mxu0 0.0
      %466 = vmatmul.mubr.f32.gmra.mrb[0].mxu0 %v329
      %v467 = vpop.f32.mrb[0].mxu0
      %v468 = vadd.f32 %v398, %v467
      %v469 = vpop.f32.mrb[0].mxu0
      %470 = vdwg.mxu0
      %v471 = vmax.f32 %v468, 0.0
      %v472 = vld [vmem:[%s3] sm:$0xff]
      %v473 = vld [vmem:[%s3 + $0x8] sm:$0xff]
      %v474 = vld [vmem:[%s3 + $0x10] sm:$0xff]
      %v475 = vld [vmem:[%s3 + $0x18] sm:$0xff]
      %v476 = vld [vmem:[%s3 + $0x20] sm:$0xff]
      %v477 = vld [vmem:[%s3 + $0x28] sm:$0xff]
      %v478 = vld [vmem:[%s3 + $0x30] sm:$0xff]
      %v479 = vld [vmem:[%s3 + $0x38] sm:$0xff]
      %v480 = vld [vmem:[%s4] sm:$0x1]
      %v482 = vlaneseq
      %v483 = vshrl.u32 %v482, 7
      %v484 = vsub.s32 0, %v483
      %v485 = vrot.slane %v480, %v484
      %v488 = vsel %vm327, %v471, 0
      %490 = vmatprep.subr.mxu0 0.0
      %491 = vmatpush1.msra.mxu0 %v472
      %492 = vmatprep.subr.mxu0 0.0
      %493 = vmatpush1.msra.mxu0 %v473
      %494 = vmatprep.subr.mxu0 0.0
      %495 = vmatpush1.msra.mxu0 %v474
      %496 = vmatprep.subr.mxu0 0.0
      %497 = vmatpush1.msra.mxu0 %v475
      %498 = vmatprep.subr.mxu0 0.0
      %499 = vmatpush1.msra.mxu0 %v476
      %500 = vmatprep.subr.mxu0 0.0
      %501 = vmatpush1.msra.mxu0 %v477
      %502 = vmatprep.subr.mxu0 0.0
      %503 = vmatpush1.msra.mxu0 %v478
      %504 = vmatprep.subr.mxu0 0.0
      %505 = vmatpush1.msra.mxu0 %v479
      %506 = vmatprep.subr.mxu0 0.0
      %507 = vmatpush1.msra.mxu0 0.0
      %508 = vmatprep.subr.mxu0 0.0
      %509 = vmatpush1.msra.mxu0 0.0
      %510 = vmatprep.subr.mxu0 0.0
      %511 = vmatpush1.msra.mxu0 0.0
      %512 = vmatprep.subr.mxu0 0.0
      %513 = vmatpush1.msra.mxu0 0.0
      %514 = vmatprep.subr.mxu0 0.0
      %515 = vmatpush1.msra.mxu0 0.0
      %516 = vmatprep.subr.mxu0 0.0
      %517 = vmatpush1.msra.mxu0 0.0
      %518 = vmatprep.subr.mxu0 0.0
      %519 = vmatpush1.msra.mxu0 0.0
      %520 = vmatprep.subr.mxu0 0.0
      %521 = vmatpush1.msra.mxu0 0.0
      %522 = vmatprep.subr.mxu0 0.0
      %523 = vmatpush1.msra.mxu0 0.0
      %524 = vmatprep.subr.mxu0 0.0
      %525 = vmatpush1.msra.mxu0 0.0
      %526 = vmatprep.subr.mxu0 0.0
      %527 = vmatpush1.msra.mxu0 0.0
      %528 = vmatprep.subr.mxu0 0.0
      %529 = vmatpush1.msra.mxu0 0.0
      %530 = vmatprep.subr.mxu0 0.0
      %531 = vmatpush1.msra.mxu0 0.0
      %532 = vmatprep.subr.mxu0 0.0
      %533 = vmatpush1.msra.mxu0 0.0
      %534 = vmatprep.subr.mxu0 0.0
      %535 = vmatpush1.msra.mxu0 0.0
      %536 = vmatprep.subr.mxu0 0.0
      %537 = vmatpush1.msra.mxu0 0.0
      %538 = vmatprep.subr.mxu0 0.0
      %539 = vmatpush1.msra.mxu0 0.0
      %540 = vmatprep.subr.mxu0 0.0
      %541 = vmatpush1.msra.mxu0 0.0
      %542 = vmatprep.subr.mxu0 0.0
      %543 = vmatpush1.msra.mxu0 0.0
      %544 = vmatprep.subr.mxu0 0.0
      %545 = vmatpush1.msra.mxu0 0.0
      %546 = vmatprep.subr.mxu0 0.0
      %547 = vmatpush1.msra.mxu0 0.0
      %548 = vmatprep.subr.mxu0 0.0
      %549 = vmatpush1.msra.mxu0 0.0
      %550 = vmatprep.subr.mxu0 0.0
      %551 = vmatpush1.msra.mxu0 0.0
      %552 = vmatprep.subr.mxu0 0.0
      %553 = vmatpush1.msra.mxu0 0.0
      %554 = vmatprep.mubr.f32.mxu0 0.0
      %555 = vmatmul.mubr.f32.gmra.mrb[0].mxu0 %v488
      %v556 = vpop.f32.mrb[0].mxu0
      %v557 = vadd.f32 %v485, %v556
      %v558 = vpop.f32.mrb[0].mxu0
      %559 = vdwg.mxu0
      %v560 = vmax.f32 %v557, 0.0
      %v561 = vld [vmem:[%s5] sm:$0xff]
      %v562 = vld [vmem:[%s5 + $0x8] sm:$0xff]
      %v563 = vld [vmem:[%s6] sm:$0x1]
      %v565 = vlaneseq
      %v566 = vshrl.u32 %v565, 7
      %v567 = vsub.s32 0, %v566
      %v568 = vrot.slane %v563, %v567
      %vm570 = vcmask 130048
      %v572 = vsel %vm570, %v560, 0
      %574 = vmatprep.subr.mxu0 0.0
      %575 = vmatpush1.msra.mxu0 %v561
      %576 = vmatprep.subr.mxu0 0.0
      %577 = vmatpush1.msra.mxu0 %v562
      %578 = vmatprep.subr.mxu0 0.0
      %579 = vmatpush1.msra.mxu0 0.0
      %580 = vmatprep.subr.mxu0 0.0
      %581 = vmatpush1.msra.mxu0 0.0
      %582 = vmatprep.subr.mxu0 0.0
      %583 = vmatpush1.msra.mxu0 0.0
      %584 = vmatprep.subr.mxu0 0.0
      %585 = vmatpush1.msra.mxu0 0.0
      %586 = vmatprep.subr.mxu0 0.0
      %587 = vmatpush1.msra.mxu0 0.0
      %588 = vmatprep.subr.mxu0 0.0
      %589 = vmatpush1.msra.mxu0 0.0
      %590 = vmatprep.subr.mxu0 0.0
      %591 = vmatpush1.msra.mxu0 0.0
      %592 = vmatprep.subr.mxu0 0.0
      %593 = vmatpush1.msra.mxu0 0.0
      %594 = vmatprep.subr.mxu0 0.0
      %595 = vmatpush1.msra.mxu0 0.0
      %596 = vmatprep.subr.mxu0 0.0
      %597 = vmatpush1.msra.mxu0 0.0
      %598 = vmatprep.subr.mxu0 0.0
      %599 = vmatpush1.msra.mxu0 0.0
      %600 = vmatprep.subr.mxu0 0.0
      %601 = vmatpush1.msra.mxu0 0.0
      %602 = vmatprep.subr.mxu0 0.0
      %603 = vmatpush1.msra.mxu0 0.0
      %604 = vmatprep.subr.mxu0 0.0
      %605 = vmatpush1.msra.mxu0 0.0
      %606 = vmatprep.subr.mxu0 0.0
      %607 = vmatpush1.msra.mxu0 0.0
      %608 = vmatprep.subr.mxu0 0.0
      %609 = vmatpush1.msra.mxu0 0.0
      %610 = vmatprep.subr.mxu0 0.0
      %611 = vmatpush1.msra.mxu0 0.0
      %612 = vmatprep.subr.mxu0 0.0
      %613 = vmatpush1.msra.mxu0 0.0
      %614 = vmatprep.subr.mxu0 0.0
      %615 = vmatpush1.msra.mxu0 0.0
      %616 = vmatprep.subr.mxu0 0.0
      %617 = vmatpush1.msra.mxu0 0.0
      %618 = vmatprep.subr.mxu0 0.0
      %619 = vmatpush1.msra.mxu0 0.0
      %620 = vmatprep.subr.mxu0 0.0
      %621 = vmatpush1.msra.mxu0 0.0
      %622 = vmatprep.subr.mxu0 0.0
      %623 = vmatpush1.msra.mxu0 0.0
      %624 = vmatprep.subr.mxu0 0.0
      %625 = vmatpush1.msra.mxu0 0.0
      %626 = vmatprep.subr.mxu0 0.0
      %627 = vmatpush1.msra.mxu0 0.0
      %628 = vmatprep.subr.mxu0 0.0
      %629 = vmatpush1.msra.mxu0 0.0
      %630 = vmatprep.subr.mxu0 0.0
      %631 = vmatpush1.msra.mxu0 0.0
      %632 = vmatprep.subr.mxu0 0.0
      %633 = vmatpush1.msra.mxu0 0.0
      %634 = vmatprep.subr.mxu0 0.0
      %635 = vmatpush1.msra.mxu0 0.0
      %636 = vmatprep.subr.mxu0 0.0
      %637 = vmatpush1.msra.mxu0 0.0
      %638 = vmatprep.mubr.f32.mxu0 0.0
      %639 = vmatmul.mubr.f32.gmra.mrb[0].mxu0 %v572
      %v640 = vpop.f32.mrb[0].mxu0
      %v641 = vadd.f32 %v568, %v640
      %v642 = vpop.f32.mrb[0].mxu0
      %643 = vdwg.mxu0
      %645 = vrot.lane.b32.xlu0 %v641, 127
      %v646 = vpop.permute.xlu0 %645
      %v648 = vsub.f32 %v641, %v646
      %v649 = vsub.f32 0.0, %v648
      %v650 = vmul.f32 %v649, 1.442695
      %v651 = vpow.pop %v650
      %v652 = vadd.f32 %v651, 1.0
      %v653 = vrcp.pop %v652
      %v654 = vmul.f32 1.0, %v653
      %v655 = vsub.f32 1.0, %v654
      %657 = vrot.lane.b32.xlu0 %v655, 1
      %v658 = vpop.permute.xlu0 %657
      %vm660 = vcmask 7168
      %v661 = vsel %vm660, %v654, %v658
      %vm662 = vcmask 15360
      %663 = vst.msk [vmem:[%s276] sm:$0xff] %vm662, %v661
      %p664 = scmp.lt.s32.totalorder %s18, 2
      %s665 = scalar_select %p664, %s18, 2
      %s666 = smul.addr %s665, 8
      %s667 = scalar_lea.vmem %s7, %s666
      // Predicated region
      $region49: #{tpu_custom_call.1} parent=47 // pred_check
        %p668 = pneg %p188
      $region50: #{tpu_custom_call.1} parent=47 // pred_check_branch
        %670 = sbr.rel (%p668) target = $region52
      $region51: #{tpu_custom_call.1} parent=47 // pred_region
        _
      $region52: #{tpu_custom_call.1} parent=47 // pred_fallthru
        _
    $region48: #{tpu_custom_call.1} parent=5 // pred_fallthru
      _
    %p671 = scmp.le.s32.totalorder 2, %s13
    // Predicated region
    $region53: #{tpu_custom_call.1} parent=5 // pred_check
      %p672 = pneg %p671
    $region54: #{tpu_custom_call.1} parent=5 // pred_check_branch
      %674 = sbr.rel (%p672) target = $region56
    $region55: #{tpu_custom_call.1} parent=5 // pred_region
      %s675 = ssub.s32 %s13, 2
      // Predicated region
      $region57: #{tpu_custom_call.1} parent=55 // pred_check
        %p676 = pneg %p194
      $region58: #{tpu_custom_call.1} parent=55 // pred_check_branch
        %678 = sbr.rel (%p676) target = $region60
      $region59: #{tpu_custom_call.1} parent=55 // pred_region
        %p679 = scmp.lt.s32.totalorder %s19, 2
        %s680 = scalar_select %p679, %s19, 2
        %s681 = smul.addr %s680, 8
        %s682 = scalar_lea.vmem %s7, %s681
      $region60: #{tpu_custom_call.1} parent=55 // pred_fallthru
        _
    $region56: #{tpu_custom_call.1} parent=5 // pred_fallthru
      _
  $region6: #{tpu_custom_call.1} parent=0 // loop_footer
    %s17 = sadd.s32 1, %s13
  $region7: #{tpu_custom_call.1} parent=0 // loop_footer_branch
    %12 = sbr.rel target = $region3
  $region8: #{tpu_custom_call.1} parent=0 // loop_exit
    _

</llo_original>
